<compile_context>
chip_gen: v6e
topology: v6e:2x2x1
jax: 0.10.0
libtpu: 0.0.40
codegen_flags: <defaults>
</compile_context>

<pallas_src>
import functools

import jax
import jax.numpy as jnp
from jax.experimental import pallas as pl
from jax.experimental.pallas import tpu as pltpu

MARGIN = 1.0  # TripletLoss.__init__ default


def _round_up(x, m):
    return ((x + m - 1) // m) * m


def _pick_block_b(B, Dp, strip_cap_bytes):
    """Lane-dense tile size: prefer >= 2 row blocks (v7x has 2 TensorCores that
    shard the 'parallel' row axis), cap for large Dp (v7x: 64 MiB VMEM) and keep
    the cached sd strip within budget."""
    b128 = _round_up(B, 128)
    bb = min(512, max(128, (b128 // 2) // 128 * 128))
    if Dp > 1024:   # keep double-buffered (block_b, Dp) bf16 tiles small on v7x
        bb = min(bb, 256)
    while bb > 128 and bb * _round_up(B, bb) * 4 > strip_cap_bytes:
        bb -= 128
    # TODO(synk): for very large batches (B >~ 32K) the (block_b, Bp) sd strip
    # no longer fits the VMEM budget even at block_b=128; a two-pass recompute
    # kernel (no strip cache) would be needed for that regime.
    return bb


# TODO(synk): only the default mining='hardest' branch is implemented; the
# 'semi' and 'all' mining modes of TripletLoss are not translated.
def _triplet_hardest_kernel(f_row_ref, f_col_ref, sq_row_ref, sq_col_ref,
                            lab_row_ref, lab_colt_ref, lab_colf_ref,
                            sum_ref, cnt_ref, strip_ref, hn_ref, *, margin):
    k = pl.program_id(1)                 # column block (reduction axis, last)
    tm = f_row_ref.shape[0]
    tn = f_col_ref.shape[0]
    nk = strip_ref.shape[0]              # number of column blocks (static)

    # Per-row-block init of the scratch / output accumulators.
    @pl.when(k == 0)
    def _init():
        hn_ref[...] = jnp.full_like(hn_ref, jnp.inf)
        sum_ref[...] = jnp.zeros_like(sum_ref)
        cnt_ref[...] = jnp.zeros_like(cnt_ref)

    # Gram tile on the MXU: (tm, Dp) . (tn, Dp)^T, bf16 (or f32) in, f32 acc.
    g = jax.lax.dot_general(f_row_ref[...], f_col_ref[...],
                            dimension_numbers=(((1,), (1,)), ((), ())),
                            preferred_element_type=jnp.float32)

    # pairwise_distance(features, features, squared=True) on this tile.
    # Padded columns carry a huge sq_col; padded rows only produce unused rows.
    sd = jnp.maximum(sq_row_ref[...] - 2.0 * g + sq_col_ref[...], 0.0)

    # Cache the tile so the hinge pass does not recompute the matmul/distance.
    strip_ref[k] = sd

    # Running hardest-negative min, kept lane-wide (pure VALU mins per tile;
    # the single cross-lane reduce happens once per row block in _finalize).
    # positives -> +inf; padded columns lose automatically via the huge sq_col;
    # padded rows never match any column label (distinct sentinels).
    pos_t = lab_row_ref[...] == lab_colt_ref[...]
    masked = jnp.where(pos_t, jnp.float32(jnp.inf), sd)
    m = hn_ref[...]
    for c in range(tn // 128):
        m = jnp.minimum(m, masked[:, c * 128:(c + 1) * 128])
    hn_ref[...] = m

    @pl.when(k == nk - 1)
    def _finalize():
        # hardest negative per anchor of this row block (one XLU lane-reduce).
        hn = jnp.min(hn_ref[...], axis=1, keepdims=True)                # (tm, 1)
        thr = jnp.broadcast_to(hn, (tm, 128)) - margin                  # hoisted
        lab_r = jnp.broadcast_to(lab_row_ref[...], (tm, 128))           # hoisted
        s8 = jnp.zeros((8, 128), jnp.float32)
        c8 = jnp.zeros((8, 128), jnp.float32)
        for kb in range(nk):                       # static: cached col blocks
            for c in range(tn // 128):             # static: 128-lane chunks
                col0 = kb * tn + c * 128
                sd_c = strip_ref[kb, :, c * 128:(c + 1) * 128]          # (tm, 128)
                pos_c = lab_r == lab_colf_ref[:, col0:col0 + 128]
                # fused hinge + positive mask: max(0, sd - hn + margin) on positives
                hinge = jnp.where(pos_c, jnp.maximum(sd_c - thr, 0.0), 0.0)
                # tile-aligned (tm,128)->(tm//8,8,128) reshape; leading-axis sum
                # is pure elementwise vreg adds (VALU), not an XLU tree reduce.
                s8 = s8 + jnp.sum(hinge.reshape(tm // 8, 8, 128), axis=0)
                c8 = c8 + jnp.sum(pos_c.astype(jnp.float32).reshape(tm // 8, 8, 128),
                                  axis=0)
        sum_ref[0] = s8
        cnt_ref[0] = c8


def triplet_loss_hardest(features, labels, margin=MARGIN, block_b=None,
                         gram_dtype=jnp.bfloat16,
                         vmem_limit_bytes=48 * 1024 * 1024,
                         strip_cap_bytes=16 * 1024 * 1024):
    """features: f[B, D]; labels: int[B] -> scalar f32 loss
    (== TripletLoss(margin, mining='hardest')(features, labels)).

    Tuning notes: defaults are v7x-safe (64 MiB VMEM, 2 TensorCores).  On
    v5e/v6e (128 MiB VMEM, 1 TC) pass e.g. block_b=1024,
    vmem_limit_bytes=96<<20, strip_cap_bytes=48<<20 for bigger tiles.
    gram_dtype=jnp.float32 gives exact f32 distances (slower MXU path) when
    embeddings are near-duplicates and the bf16 Gram's cancellation matters.
    """
    B, D = features.shape
    f32 = features.astype(jnp.float32)
    Dp = _round_up(D, 128)

    if block_b is None:
        block_b = _pick_block_b(B, Dp, strip_cap_bytes)
    assert block_b % 128 == 0 and block_b >= 128
    Bp = _round_up(B, block_b)
    nb = Bp // block_b

    strip_bytes = nb * block_b * block_b * 4
    vmem_limit = max(int(vmem_limit_bytes), strip_bytes + 24 * 1024 * 1024)

    # Zero padding leaves the Gram matrix / norms of real rows unchanged.
    f_pad = jnp.zeros((Bp, Dp), jnp.float32).at[:B, :D].set(f32)
    f_g = f_pad.astype(gram_dtype)             # MXU operand (bf16 by default)

    # Squared norms computed once (O(B*D)); padded columns get a huge value so
    # they can never win the hardest-negative min.
    BIG = jnp.float32(1e30)
    sq = jnp.sum(f_pad * f_pad, axis=1)
    sq_row = sq.reshape(Bp, 1)
    sq_col = sq.at[B:].set(BIG).reshape(1, Bp)

    # Distinct label sentinels for padded rows/cols => positive mask is False
    # for every padded pair, with no in-kernel index arithmetic.
    lab = labels.reshape(-1).astype(jnp.int32)
    ROW_PAD = jnp.iinfo(jnp.int32).min
    COL_PAD = jnp.iinfo(jnp.int32).min + 1
    lab_row = jnp.full((Bp, 1), ROW_PAD, jnp.int32).at[:B, 0].set(lab)
    lab_col = jnp.full((1, Bp), COL_PAD, jnp.int32).at[0, :B].set(lab)

    kernel = functools.partial(_triplet_hardest_kernel, margin=float(margin))

    sums, cnts = pl.pallas_call(
        kernel,
        out_shape=(jax.ShapeDtypeStruct((nb, 8, 128), jnp.float32),
                   jax.ShapeDtypeStruct((nb, 8, 128), jnp.float32)),
        grid_spec=pltpu.PrefetchScalarGridSpec(
            num_scalar_prefetch=0,
            grid=(nb, nb),
            in_specs=[
                pl.BlockSpec((block_b, Dp), lambda i, k: (i, 0)),   # anchor-row features
                pl.BlockSpec((block_b, Dp), lambda i, k: (k, 0)),   # column features (same array)
                pl.BlockSpec((block_b, 1), lambda i, k: (i, 0)),    # anchor ||f||^2
                pl.BlockSpec((1, block_b), lambda i, k: (0, k)),    # column ||f||^2 (padded=BIG)
                pl.BlockSpec((block_b, 1), lambda i, k: (i, 0)),    # anchor labels
                pl.BlockSpec((1, block_b), lambda i, k: (0, k)),    # column labels, current tile
                pl.BlockSpec((1, Bp), lambda i, k: (0, 0)),         # column labels, full (resident)
            ],
            out_specs=(
                pl.BlockSpec((1, 8, 128), lambda i, k: (i, 0, 0)),  # hinge partial sums
                pl.BlockSpec((1, 8, 128), lambda i, k: (i, 0, 0)),  # positive-pair counts
            ),
            scratch_shapes=[
                pltpu.VMEM((nb, block_b, block_b), jnp.float32),    # sd strip cache
                pltpu.VMEM((block_b, 128), jnp.float32),            # lane-wide hardest-neg min
            ],
        ),
        compiler_params=pltpu.CompilerParams(
            dimension_semantics=("parallel", "arbitrary"),
            vmem_limit_bytes=vmem_limit,
        ),
    )(f_g, f_g, sq_row, sq_col, lab_row, lab_col, lab_col)

    total = jnp.sum(sums)   # padded / unused accumulator slots are exactly zero
    count = jnp.sum(cnts)
    return total / count


def triplet_loss_ref(features, labels, margin=MARGIN, match_bf16=False):
    """Pure-JAX reference mirroring the PyTorch 'hardest' branch.

    match_bf16=True rounds the Gram-matrix inputs to bf16 exactly like the
    kernel's MXU feed (norms / everything else stays f32)."""
    f = features.astype(jnp.float32)
    sq = jnp.sum(f * f, axis=1)
    fg = f.astype(jnp.bfloat16).astype(jnp.float32) if match_bf16 else f
    g = fg @ fg.T
    sd = jnp.maximum(sq[:, None] - 2.0 * g + sq[None, :], 0.0)
    lab = labels.reshape(-1)
    pos = lab[:, None] == lab[None, :]
    hn = jnp.min(jnp.where(pos, jnp.inf, sd), axis=1, keepdims=True)
    terms = jnp.where(pos, jnp.maximum(sd - hn + margin, 0.0), 0.0)
    return jnp.sum(terms) / jnp.sum(pos)


if __name__ == "__main__":
    key = jax.random.PRNGKey(0)
    k1, k2, k3, k4 = jax.random.split(key, 4)

    # Case 1: tiny shape (exercises batch/feature padding to 128-lane tiles).
    B1, D1 = 8, 32
    f1 = jax.random.normal(k1, (B1, D1), dtype=jnp.float32)
    l1 = jax.random.randint(k2, (B1,), 0, 3, dtype=jnp.int32)
    out1 = triplet_loss_hardest(f1, l1)
    jax.block_until_ready(out1)
    ref1 = triplet_loss_ref(f1, l1, match_bf16=True)
    ref1_f32 = triplet_loss_ref(f1, l1, match_bf16=False)
    assert jnp.allclose(out1, ref1, atol=1e-3, rtol=1e-3), (float(out1), float(ref1))
    assert jnp.allclose(out1, ref1_f32, atol=5e-2, rtol=5e-2), (float(out1), float(ref1_f32))

    # Case 1b: f32-Gram path compiles and stays close to the f32 reference.
    out1f = triplet_loss_hardest(f1, l1, gram_dtype=jnp.float32)
    jax.block_until_ready(out1f)
    assert jnp.allclose(out1f, ref1_f32, atol=5e-2, rtol=5e-2), (float(out1f), float(ref1_f32))

    # Case 2: multi-block grid (2 row blocks x 2 col blocks, padded last block).
    B2, D2 = 200, 48
    f2 = jax.random.normal(k3, (B2, D2), dtype=jnp.float32)
    l2 = jax.random.randint(k4, (B2,), 0, 7, dtype=jnp.int32)
    out2 = triplet_loss_hardest(f2, l2, block_b=128)
    jax.block_until_ready(out2)
    ref2 = triplet_loss_ref(f2, l2, match_bf16=True)
    assert jnp.allclose(out2, ref2, atol=1e-3, rtol=1e-3), (float(out2), float(ref2))

    print("KERNEL_OK")
</pallas_src>

<mosaic_0001>
module attributes {stable_mosaic.version = 11 : i64} {
  func.func @_triplet_hardest_kernel(%arg0: i32, %arg1: i32, %arg2: memref<128x128xbf16, #tpu.memory_space<vmem>>, %arg3: memref<128x128xbf16, #tpu.memory_space<vmem>>, %arg4: memref<128x1xf32, #tpu.memory_space<vmem>>, %arg5: memref<1x128xf32, #tpu.memory_space<vmem>>, %arg6: memref<128x1xi32, #tpu.memory_space<vmem>>, %arg7: memref<1x128xi32, #tpu.memory_space<vmem>>, %arg8: memref<1x128xi32, #tpu.memory_space<vmem>>, %arg9: memref<1x8x128xf32, #tpu.memory_space<vmem>>, %arg10: memref<1x8x128xf32, #tpu.memory_space<vmem>>, %arg11: memref<1x128x128xf32, #tpu.memory_space<vmem>>, %arg12: memref<128x128xf32, #tpu.memory_space<vmem>>) attributes {dimension_semantics = [#tpu.dimension_semantics<parallel>, #tpu.dimension_semantics<arbitrary>], iteration_bounds = array<i64: 1, 1>, scalar_prefetch = 0 : i64, scratch_operands = 2 : i64, tpu.core_type = #tpu.core_type<tc>, window_params = [{transform_indices = @transform_0, window_bounds = array<i64: 128, 128>}, {transform_indices = @transform_1, window_bounds = array<i64: 128, 128>}, {transform_indices = @transform_2, window_bounds = array<i64: 128, 1>}, {transform_indices = @transform_3, window_bounds = array<i64: 1, 128>}, {transform_indices = @transform_4, window_bounds = array<i64: 128, 1>}, {transform_indices = @transform_5, window_bounds = array<i64: 1, 128>}, {pipeline_mode = #tpu.pipeline_mode<synchronous>, transform_indices = @transform_6, window_bounds = array<i64: 1, 128>}, {transform_indices = @transform_7, window_bounds = array<i64: 1, 8, 128>}, {transform_indices = @transform_8, window_bounds = array<i64: 1, 8, 128>}]} {
    %c0_i32 = arith.constant 0 : i32
    %0 = arith.cmpi eq, %arg1, %c0_i32 : i32
    %1 = arith.extui %0 : i1 to i32
    %c0_i32_0 = arith.constant 0 : i32
    %2 = arith.cmpi ne, %1, %c0_i32_0 : i32
    scf.if %2 {
      %cst_23 = arith.constant 0x7F800000 : f32
      %33 = vector.broadcast %cst_23 : f32 to vector<128x128xf32>
      %c0_24 = arith.constant 0 : index
      %c0_25 = arith.constant 0 : index
      %34 = vector.load %arg12[%c0_24, %c0_25] : memref<128x128xf32, #tpu.memory_space<vmem>>, vector<128x128xf32>
      tpu.vector_store %arg12[%c0_24, %c0_25], %33 {strides = array<i32>} : memref<128x128xf32, #tpu.memory_space<vmem>>, vector<128x128xf32>,
      %cst_26 = arith.constant 0.000000e+00 : f32
      %35 = vector.broadcast %cst_26 : f32 to vector<1x8x128xf32>
      %c0_27 = arith.constant 0 : index
      %c0_28 = arith.constant 0 : index
      %c0_29 = arith.constant 0 : index
      %36 = vector.load %arg9[%c0_27, %c0_28, %c0_29] : memref<1x8x128xf32, #tpu.memory_space<vmem>>, vector<1x8x128xf32>
      tpu.vector_store %arg9[%c0_27, %c0_28, %c0_29], %35 {strides = array<i32>} : memref<1x8x128xf32, #tpu.memory_space<vmem>>, vector<1x8x128xf32>,
      %cst_30 = arith.constant 0.000000e+00 : f32
      %37 = vector.broadcast %cst_30 : f32 to vector<1x8x128xf32>
      %c0_31 = arith.constant 0 : index
      %c0_32 = arith.constant 0 : index
      %c0_33 = arith.constant 0 : index
      %38 = vector.load %arg10[%c0_31, %c0_32, %c0_33] : memref<1x8x128xf32, #tpu.memory_space<vmem>>, vector<1x8x128xf32>
      tpu.vector_store %arg10[%c0_31, %c0_32, %c0_33], %37 {strides = array<i32>} : memref<1x8x128xf32, #tpu.memory_space<vmem>>, vector<1x8x128xf32>,
    } else {
    }
    %c0 = arith.constant 0 : index
    %c0_1 = arith.constant 0 : index
    %3 = vector.load %arg2[%c0, %c0_1] : memref<128x128xbf16, #tpu.memory_space<vmem>>, vector<128x128xbf16>
    %c0_2 = arith.constant 0 : index
    %c0_3 = arith.constant 0 : index
    %4 = vector.load %arg3[%c0_2, %c0_3] : memref<128x128xbf16, #tpu.memory_space<vmem>>, vector<128x128xbf16>
    %cst = arith.constant dense<0.000000e+00> : vector<128x128xf32>
    %5 = tpu.matmul %3, %4, %cst {dimension_numbers = #tpu.dot_dimension_numbers<[1], [1], [0], [0], [0, 0, 1, 0], [], []>} : vector<128x128xbf16>, vector<128x128xbf16>, vector<128x128xf32> -> vector<128x128xf32>
    %c0_4 = arith.constant 0 : index
    %c0_5 = arith.constant 0 : index
    %6 = vector.load %arg4[%c0_4, %c0_5] : memref<128x1xf32, #tpu.memory_space<vmem>>, vector<128x1xf32>
    %cst_6 = arith.constant 2.000000e+00 : f32
    %7 = vector.broadcast %cst_6 : f32 to vector<128x128xf32>
    %8 = arith.mulf %7, %5 : vector<128x128xf32>
    %9 = vector.broadcast %6 : vector<128x1xf32> to vector<128x128xf32>
    %10 = arith.subf %9, %8 : vector<128x128xf32>
    %c0_7 = arith.constant 0 : index
    %c0_8 = arith.constant 0 : index
    %11 = vector.load %arg5[%c0_7, %c0_8] : memref<1x128xf32, #tpu.memory_space<vmem>>, vector<1x128xf32>
    %12 = vector.broadcast %11 : vector<1x128xf32> to vector<128x128xf32>
    %13 = arith.addf %10, %12 : vector<128x128xf32>
    %cst_9 = arith.constant 0.000000e+00 : f32
    %14 = vector.broadcast %cst_9 : f32 to vector<128x128xf32>
    %15 = arith.maximumf %13, %14 : vector<128x128xf32>
    %16 = arith.index_cast %arg1 : i32 to index
    %c0_10 = arith.constant 0 : index
    %c0_11 = arith.constant 0 : index
    %17 = vector.load %arg11[%16, %c0_10, %c0_11] : memref<1x128x128xf32, #tpu.memory_space<vmem>>, vector<1x128x128xf32>
    %18 = vector.shape_cast %17 : vector<1x128x128xf32> to vector<128x128xf32>
    %19 = vector.shape_cast %15 : vector<128x128xf32> to vector<1x128x128xf32>
    tpu.vector_store %arg11[%16, %c0_10, %c0_11], %19 {strides = array<i32>} : memref<1x128x128xf32, #tpu.memory_space<vmem>>, vector<1x128x128xf32>,
    %c0_12 = arith.constant 0 : index
    %c0_13 = arith.constant 0 : index
    %20 = vector.load %arg6[%c0_12, %c0_13] : memref<128x1xi32, #tpu.memory_space<vmem>>, vector<128x1xi32>
    %c0_14 = arith.constant 0 : index
    %c0_15 = arith.constant 0 : index
    %21 = vector.load %arg7[%c0_14, %c0_15] : memref<1x128xi32, #tpu.memory_space<vmem>>, vector<1x128xi32>
    %22 = vector.broadcast %20 : vector<128x1xi32> to vector<128x128xi32>
    %23 = vector.broadcast %21 : vector<1x128xi32> to vector<128x128xi32>
    %24 = arith.cmpi eq, %22, %23 : vector<128x128xi32>
    %cst_16 = arith.constant 0x7F800000 : f32
    %25 = vector.broadcast %cst_16 : f32 to vector<128x128xf32>
    %26 = arith.select %24, %25, %15 : vector<128x128xi1>, vector<128x128xf32>
    %c0_17 = arith.constant 0 : index
    %c0_18 = arith.constant 0 : index
    %27 = vector.load %arg12[%c0_17, %c0_18] : memref<128x128xf32, #tpu.memory_space<vmem>>, vector<128x128xf32>
    %28 = arith.minimumf %27, %26 : vector<128x128xf32>
    %c0_19 = arith.constant 0 : index
    %c0_20 = arith.constant 0 : index
    %29 = vector.load %arg12[%c0_19, %c0_20] : memref<128x128xf32, #tpu.memory_space<vmem>>, vector<128x128xf32>
    tpu.vector_store %arg12[%c0_19, %c0_20], %28 {strides = array<i32>} : memref<128x128xf32, #tpu.memory_space<vmem>>, vector<128x128xf32>,
    %c0_i32_21 = arith.constant 0 : i32
    %30 = arith.cmpi eq, %arg1, %c0_i32_21 : i32
    %31 = arith.extui %30 : i1 to i32
    %c0_i32_22 = arith.constant 0 : i32
    %32 = arith.cmpi ne, %31, %c0_i32_22 : i32
    scf.if %32 {
      %c0_23 = arith.constant 0 : index
      %c0_24 = arith.constant 0 : index
      %33 = vector.load %arg12[%c0_23, %c0_24] : memref<128x128xf32, #tpu.memory_space<vmem>>, vector<128x128xf32>
      %cst_25 = arith.constant dense<0x7F800000> : vector<128xf32>
      %34 = vector.multi_reduction <minimumf>, %33, %cst_25 [1] : vector<128x128xf32> to vector<128xf32>
      %35 = vector.shape_cast %34 : vector<128xf32> to vector<128x1xf32>
      %36 = vector.shape_cast %35 : vector<128x1xf32> to vector<128x1xf32>
      %37 = vector.broadcast %36 : vector<128x1xf32> to vector<128x128xf32>
      %cst_26 = arith.constant 1.000000e+00 : f32
      %38 = vector.broadcast %cst_26 : f32 to vector<128x128xf32>
      %39 = arith.subf %37, %38 : vector<128x128xf32>
      %c0_27 = arith.constant 0 : index
      %c0_28 = arith.constant 0 : index
      %40 = vector.load %arg6[%c0_27, %c0_28] : memref<128x1xi32, #tpu.memory_space<vmem>>, vector<128x1xi32>
      %41 = vector.shape_cast %40 : vector<128x1xi32> to vector<128x1xi32>
      %42 = vector.broadcast %41 : vector<128x1xi32> to vector<128x128xi32>
      %cst_29 = arith.constant 0.000000e+00 : f32
      %43 = vector.broadcast %cst_29 : f32 to vector<8x128xf32>
      %cst_30 = arith.constant 0.000000e+00 : f32
      %44 = vector.broadcast %cst_30 : f32 to vector<8x128xf32>
      %c0_31 = arith.constant 0 : index
      %c0_32 = arith.constant 0 : index
      %c0_33 = arith.constant 0 : index
      %45 = vector.load %arg11[%c0_31, %c0_32, %c0_33] : memref<1x128x128xf32, #tpu.memory_space<vmem>>, vector<1x128x128xf32>
      %46 = vector.shape_cast %45 : vector<1x128x128xf32> to vector<128x128xf32>
      %c0_34 = arith.constant 0 : index
      %c0_35 = arith.constant 0 : index
      %47 = vector.load %arg8[%c0_34, %c0_35] : memref<1x128xi32, #tpu.memory_space<vmem>>, vector<1x128xi32>
      %48 = vector.broadcast %47 : vector<1x128xi32> to vector<128x128xi32>
      %49 = arith.cmpi eq, %42, %48 : vector<128x128xi32>
      %50 = arith.subf %46, %39 : vector<128x128xf32>
      %cst_36 = arith.constant 0.000000e+00 : f32
      %51 = vector.broadcast %cst_36 : f32 to vector<128x128xf32>
      %52 = arith.maximumf %50, %51 : vector<128x128xf32>
      %cst_37 = arith.constant 0.000000e+00 : f32
      %53 = vector.broadcast %cst_37 : f32 to vector<128x128xf32>
      %54 = arith.select %49, %52, %53 : vector<128x128xi1>, vector<128x128xf32>
      %55 = vector.shape_cast %54 : vector<128x128xf32> to vector<16x8x128xf32>
      %cst_38 = arith.constant dense<0.000000e+00> : vector<8x128xf32>
      %56 = vector.multi_reduction <add>, %55, %cst_38 [0] : vector<16x8x128xf32> to vector<8x128xf32>
      %57 = arith.addf %43, %56 : vector<8x128xf32>
      %58 = arith.extui %49 : vector<128x128xi1> to vector<128x128xi32>
      %59 = arith.sitofp %58 : vector<128x128xi32> to vector<128x128xf32>
      %60 = vector.shape_cast %59 : vector<128x128xf32> to vector<16x8x128xf32>
      %cst_39 = arith.constant dense<0.000000e+00> : vector<8x128xf32>
      %61 = vector.multi_reduction <add>, %60, %cst_39 [0] : vector<16x8x128xf32> to vector<8x128xf32>
      %62 = arith.addf %44, %61 : vector<8x128xf32>
      %c0_40 = arith.constant 0 : index
      %c0_41 = arith.constant 0 : index
      %c0_42 = arith.constant 0 : index
      %63 = vector.load %arg9[%c0_40, %c0_41, %c0_42] : memref<1x8x128xf32, #tpu.memory_space<vmem>>, vector<1x8x128xf32>
      %64 = vector.shape_cast %63 : vector<1x8x128xf32> to vector<8x128xf32>
      %65 = vector.shape_cast %57 : vector<8x128xf32> to vector<1x8x128xf32>
      tpu.vector_store %arg9[%c0_40, %c0_41, %c0_42], %65 {strides = array<i32>} : memref<1x8x128xf32, #tpu.memory_space<vmem>>, vector<1x8x128xf32>,
      %c0_43 = arith.constant 0 : index
      %c0_44 = arith.constant 0 : index
      %c0_45 = arith.constant 0 : index
      %66 = vector.load %arg10[%c0_43, %c0_44, %c0_45] : memref<1x8x128xf32, #tpu.memory_space<vmem>>, vector<1x8x128xf32>
      %67 = vector.shape_cast %66 : vector<1x8x128xf32> to vector<8x128xf32>
      %68 = vector.shape_cast %62 : vector<8x128xf32> to vector<1x8x128xf32>
      tpu.vector_store %arg10[%c0_43, %c0_44, %c0_45], %68 {strides = array<i32>} : memref<1x8x128xf32, #tpu.memory_space<vmem>>, vector<1x8x128xf32>,
    } else {
    }
    return
  }
  func.func @transform_0(%arg0: i32, %arg1: i32) -> (i32, i32) {
    %c0_i32 = arith.constant 0 : i32
    %c0_i32_0 = arith.constant 0 : i32
    return %arg0, %c0_i32 : i32, i32
  }
  func.func @transform_1(%arg0: i32, %arg1: i32) -> (i32, i32) {
    %c0_i32 = arith.constant 0 : i32
    %c0_i32_0 = arith.constant 0 : i32
    return %arg1, %c0_i32 : i32, i32
  }
  func.func @transform_2(%arg0: i32, %arg1: i32) -> (i32, i32) {
    %c0_i32 = arith.constant 0 : i32
    %c0_i32_0 = arith.constant 0 : i32
    return %arg0, %c0_i32 : i32, i32
  }
  func.func @transform_3(%arg0: i32, %arg1: i32) -> (i32, i32) {
    %c0_i32 = arith.constant 0 : i32
    %c0_i32_0 = arith.constant 0 : i32
    return %c0_i32, %arg1 : i32, i32
  }
  func.func @transform_4(%arg0: i32, %arg1: i32) -> (i32, i32) {
    %c0_i32 = arith.constant 0 : i32
    %c0_i32_0 = arith.constant 0 : i32
    return %arg0, %c0_i32 : i32, i32
  }
  func.func @transform_5(%arg0: i32, %arg1: i32) -> (i32, i32) {
    %c0_i32 = arith.constant 0 : i32
    %c0_i32_0 = arith.constant 0 : i32
    return %c0_i32, %arg1 : i32, i32
  }
  func.func @transform_6(%arg0: i32, %arg1: i32) -> (i32, i32) {
    %c0_i32 = arith.constant 0 : i32
    %c0_i32_0 = arith.constant 0 : i32
    %c0_i32_1 = arith.constant 0 : i32
    return %c0_i32, %c0_i32_0 : i32, i32
  }
  func.func @transform_7(%arg0: i32, %arg1: i32) -> (i32, i32, i32) {
    %c0_i32 = arith.constant 0 : i32
    %c0_i32_0 = arith.constant 0 : i32
    %c0_i32_1 = arith.constant 0 : i32
    return %arg0, %c0_i32, %c0_i32_0 : i32, i32, i32
  }
  func.func @transform_8(%arg0: i32, %arg1: i32) -> (i32, i32, i32) {
    %c0_i32 = arith.constant 0 : i32
    %c0_i32_0 = arith.constant 0 : i32
    %c0_i32_1 = arith.constant 0 : i32
    return %arg0, %c0_i32, %c0_i32_0 : i32, i32, i32
  }
}

</mosaic_0001>

<llo_original>
// kernel: tpu_custom_call.1
$region0: #{tpu_custom_call.1}
  #allocation0 [shape = 'u32[]', space=smem, size = 0x4, offset = 0x4, fixed_abs, tag = 'smem constant byte address 0x4 - core index']
  #allocation1 [shape = 'u32[144,128]{1,0:T(1,128)}', space=vmem, size = 0x12000, scoped, tag = 'internal scratch']
  #allocation2 [shape = 'f32[1,128,128]{2,1,0:T(8,128)}', space=vmem, size = 0x10000, scoped, tag = 'scratch operand']
  #allocation3 [shape = 'f32[128,128]{1,0:T(8,128)}', space=vmem, size = 0x10000, scoped, tag = 'scratch operand']
  %s0 = inlined_call_operand.vmem [shape: bf16[128,128], index: 0, kind: input, shape index: {}]
  %s1 = inlined_call_operand.vmem [shape: bf16[128,128], index: 1, kind: input, shape index: {}]
  %s2 = inlined_call_operand.vmem [shape: f32[128,1], index: 2, kind: input, shape index: {}]
  %s3 = inlined_call_operand.vmem [shape: f32[1,128], index: 3, kind: input, shape index: {}]
  %s4 = inlined_call_operand.vmem [shape: s32[128,1], index: 4, kind: input, shape index: {}]
  %s5 = inlined_call_operand.vmem [shape: s32[1,128], index: 5, kind: input, shape index: {}]
  %s6 = inlined_call_operand.vmem [shape: s32[1,128], index: 6, kind: input, shape index: {}]
  %s7 = inlined_call_operand.hbm [shape: f32[1,8,128], index: 7, kind: output, shape index: {0}]
  %s8 = inlined_call_operand.hbm [shape: f32[1,8,128], index: 8, kind: output, shape index: {1}]
  %9 = xla_tuple %s7, %s8
  %s10 = sld [smem:[#allocation0]]
  $region54: #{tpu_custom_call.1} parent=0
    _
  %s12 = ssub.s32 1, %s10
  %s13 = scalar_select 0, %s12, %s10
  $region1: #{tpu_custom_call.1} parent=0
    #allocation4 [shape = 'u8[4096]{0}', space=vmem, size = 0x1000, scoped, tag = 'output window, operand 0, single buffered']
    #allocation5 [shape = 's32[1]{0}', space=sflag, size = 0x4, scoped, tag = 'scoped memory for tpu_custom_call.1']
    #allocation6 [shape = 'u8[4096]{0}', space=vmem, size = 0x1000, scoped, tag = 'output window, operand 1, single buffered']
    #allocation7 [shape = 's32[1]{0}', space=sflag, size = 0x4, scoped, tag = 'scoped memory for tpu_custom_call.1']
    %14 = vsyncpa [#allocation5], 0
    %15 = vsyncpa [#allocation7], 0
    // Predicated region
    $region2: #{tpu_custom_call.1} parent=1 // pred_check
      _
    $region3: #{tpu_custom_call.1} parent=1 // pred_check_branch
      %17 = sbr.rel (0) target = $region5
    $region4: #{tpu_custom_call.1} parent=1 // pred_region
      _
    $region5: #{tpu_custom_call.1} parent=1 // pred_fallthru
      _
    // Predicated region
    $region6: #{tpu_custom_call.1} parent=1 // pred_check
      _
    $region7: #{tpu_custom_call.1} parent=1 // pred_check_branch
      %19 = sbr.rel (0) target = $region9
    $region8: #{tpu_custom_call.1} parent=1 // pred_region
      _
    $region9: #{tpu_custom_call.1} parent=1 // pred_fallthru
      _
    // Predicated region
    $region10: #{tpu_custom_call.1} parent=1 // pred_check
      _
    $region11: #{tpu_custom_call.1} parent=1 // pred_check_branch
      %21 = sbr.rel (0) target = $region13
    $region12: #{tpu_custom_call.1} parent=1 // pred_region
      _
    $region13: #{tpu_custom_call.1} parent=1 // pred_fallthru
      _
    // Predicated region
    $region14: #{tpu_custom_call.1} parent=1 // pred_check
      _
    $region15: #{tpu_custom_call.1} parent=1 // pred_check_branch
      %23 = sbr.rel (0) target = $region17
    $region16: #{tpu_custom_call.1} parent=1 // pred_region
      _
    $region17: #{tpu_custom_call.1} parent=1 // pred_fallthru
      _
    // Predicated region
    $region18: #{tpu_custom_call.1} parent=1 // pred_check
      _
    $region19: #{tpu_custom_call.1} parent=1 // pred_check_branch
      %25 = sbr.rel (0) target = $region21
    $region20: #{tpu_custom_call.1} parent=1 // pred_region
      _
    $region21: #{tpu_custom_call.1} parent=1 // pred_fallthru
      _
    // Predicated region
    $region22: #{tpu_custom_call.1} parent=1 // pred_check
      _
    $region23: #{tpu_custom_call.1} parent=1 // pred_check_branch
      %27 = sbr.rel (0) target = $region25
    $region24: #{tpu_custom_call.1} parent=1 // pred_region
      _
    $region25: #{tpu_custom_call.1} parent=1 // pred_fallthru
      _
    // Predicated region
    $region26: #{tpu_custom_call.1} parent=1 // pred_check
      _
    $region27: #{tpu_custom_call.1} parent=1 // pred_check_branch
      %29 = sbr.rel (0) target = $region29
    $region28: #{tpu_custom_call.1} parent=1 // pred_region
      _
    $region29: #{tpu_custom_call.1} parent=1 // pred_fallthru
      _
    %p31 = scmp.eq.s32.totalorder 0, 0
    // Predicated region
    $region30: #{tpu_custom_call.1} parent=1 // pred_check
      %p32 = pneg %p31
    $region31: #{tpu_custom_call.1} parent=1 // pred_check_branch
      %34 = sbr.rel (%p32) target = $region33
    $region32: #{tpu_custom_call.1} parent=1 // pred_region
      %35 = vst [vmem:[#allocation3] sm:$0xff] inf
      %36 = vst [vmem:[#allocation3 + $0x8] sm:$0xff] inf
      %37 = vst [vmem:[#allocation3 + $0x10] sm:$0xff] inf
      %38 = vst [vmem:[#allocation3 + $0x18] sm:$0xff] inf
      %39 = vst [vmem:[#allocation3 + $0x20] sm:$0xff] inf
      %40 = vst [vmem:[#allocation3 + $0x28] sm:$0xff] inf
      %41 = vst [vmem:[#allocation3 + $0x30] sm:$0xff] inf
      %42 = vst [vmem:[#allocation3 + $0x38] sm:$0xff] inf
      %43 = vst [vmem:[#allocation3 + $0x40] sm:$0xff] inf
      %44 = vst [vmem:[#allocation3 + $0x48] sm:$0xff] inf
      %45 = vst [vmem:[#allocation3 + $0x50] sm:$0xff] inf
      %46 = vst [vmem:[#allocation3 + $0x58] sm:$0xff] inf
      %47 = vst [vmem:[#allocation3 + $0x60] sm:$0xff] inf
      %48 = vst [vmem:[#allocation3 + $0x68] sm:$0xff] inf
      %49 = vst [vmem:[#allocation3 + $0x70] sm:$0xff] inf
      %50 = vst [vmem:[#allocation3 + $0x78] sm:$0xff] inf
      %51 = vst [vmem:[#allocation4] sm:$0xff] 0.0
      %52 = vst [vmem:[#allocation6] sm:$0xff] 0.0
    $region33: #{tpu_custom_call.1} parent=1 // pred_fallthru
      _
    %v53 = vld [vmem:[%s0] sm:$0xf]
    %v54 = vld [vmem:[%s0 + $0x4] sm:$0xf]
    %v55 = vld [vmem:[%s0 + $0x8] sm:$0xf]
    %v56 = vld [vmem:[%s0 + $0xc] sm:$0xf]
    %v57 = vld [vmem:[%s0 + $0x10] sm:$0xf]
    %v58 = vld [vmem:[%s0 + $0x14] sm:$0xf]
    %v59 = vld [vmem:[%s0 + $0x18] sm:$0xf]
    %v60 = vld [vmem:[%s0 + $0x1c] sm:$0xf]
    %v61 = vld [vmem:[%s0 + $0x20] sm:$0xf]
    %v62 = vld [vmem:[%s0 + $0x24] sm:$0xf]
    %v63 = vld [vmem:[%s0 + $0x28] sm:$0xf]
    %v64 = vld [vmem:[%s0 + $0x2c] sm:$0xf]
    %v65 = vld [vmem:[%s0 + $0x30] sm:$0xf]
    %v66 = vld [vmem:[%s0 + $0x34] sm:$0xf]
    %v67 = vld [vmem:[%s0 + $0x38] sm:$0xf]
    %v68 = vld [vmem:[%s0 + $0x3c] sm:$0xf]
    %v69 = vld [vmem:[%s1] sm:$0xf]
    %v70 = vld [vmem:[%s1 + $0x4] sm:$0xf]
    %v71 = vld [vmem:[%s1 + $0x8] sm:$0xf]
    %v72 = vld [vmem:[%s1 + $0xc] sm:$0xf]
    %v73 = vld [vmem:[%s1 + $0x10] sm:$0xf]
    %v74 = vld [vmem:[%s1 + $0x14] sm:$0xf]
    %v75 = vld [vmem:[%s1 + $0x18] sm:$0xf]
    %v76 = vld [vmem:[%s1 + $0x1c] sm:$0xf]
    %v77 = vld [vmem:[%s1 + $0x20] sm:$0xf]
    %v78 = vld [vmem:[%s1 + $0x24] sm:$0xf]
    %v79 = vld [vmem:[%s1 + $0x28] sm:$0xf]
    %v80 = vld [vmem:[%s1 + $0x2c] sm:$0xf]
    %v81 = vld [vmem:[%s1 + $0x30] sm:$0xf]
    %v82 = vld [vmem:[%s1 + $0x34] sm:$0xf]
    %v83 = vld [vmem:[%s1 + $0x38] sm:$0xf]
    %v84 = vld [vmem:[%s1 + $0x3c] sm:$0xf]
    %v101 = vunpack.c.l.b16 %v53
    %v102 = vunpack.c.l.b16 %v54
    %v103 = vunpack.c.l.b16 %v55
    %v104 = vunpack.c.l.b16 %v56
    %v105 = vunpack.c.l.b16 %v57
    %v106 = vunpack.c.l.b16 %v58
    %v107 = vunpack.c.l.b16 %v59
    %v108 = vunpack.c.l.b16 %v60
    %v109 = vunpack.c.l.b16 %v61
    %v110 = vunpack.c.l.b16 %v62
    %v111 = vunpack.c.l.b16 %v63
    %v112 = vunpack.c.l.b16 %v64
    %v113 = vunpack.c.l.b16 %v65
    %v114 = vunpack.c.l.b16 %v66
    %v115 = vunpack.c.l.b16 %v67
    %v116 = vunpack.c.l.b16 %v68
    %v117 = vpack.c.b16 %v102, %v101
    %v118 = vpack.c.b16 %v104, %v103
    %v119 = vpack.c.b16 %v106, %v105
    %v120 = vpack.c.b16 %v108, %v107
    %v121 = vpack.c.b16 %v110, %v109
    %v122 = vpack.c.b16 %v112, %v111
    %v123 = vpack.c.b16 %v114, %v113
    %v124 = vpack.c.b16 %v116, %v115
    %v149 = vunpack.c.l.b16 %v69
    %v150 = vunpack.c.l.b16 %v70
    %v151 = vunpack.c.l.b16 %v71
    %v152 = vunpack.c.l.b16 %v72
    %v153 = vunpack.c.l.b16 %v73
    %v154 = vunpack.c.l.b16 %v74
    %v155 = vunpack.c.l.b16 %v75
    %v156 = vunpack.c.l.b16 %v76
    %v157 = vunpack.c.l.b16 %v77
    %v158 = vunpack.c.l.b16 %v78
    %v159 = vunpack.c.l.b16 %v79
    %v160 = vunpack.c.l.b16 %v80
    %v161 = vunpack.c.l.b16 %v81
    %v162 = vunpack.c.l.b16 %v82
    %v163 = vunpack.c.l.b16 %v83
    %v164 = vunpack.c.l.b16 %v84
    %v165 = vpack.c.b16 %v150, %v149
    %v166 = vpack.c.b16 %v152, %v151
    %v167 = vpack.c.b16 %v154, %v153
    %v168 = vpack.c.b16 %v156, %v155
    %v169 = vpack.c.b16 %v158, %v157
    %v170 = vpack.c.b16 %v160, %v159
    %v171 = vpack.c.b16 %v162, %v161
    %v172 = vpack.c.b16 %v164, %v163
    %181 = vmatprep.subr.bf16.mxu0 0
    %182 = vmatpush1.bf16.xpose.msra.mxu0 %v172
    %183 = vmatprep.subr.bf16.mxu0 0
    %184 = vmatpush1.bf16.xpose.msra.mxu0 %v171
    %185 = vmatprep.subr.bf16.mxu0 0
    %186 = vmatpush1.bf16.xpose.msra.mxu0 %v170
    %187 = vmatprep.subr.bf16.mxu0 0
    %188 = vmatpush1.bf16.xpose.msra.mxu0 %v169
    %189 = vmatprep.subr.bf16.mxu0 0
    %190 = vmatpush1.bf16.xpose.msra.mxu0 %v168
    %191 = vmatprep.subr.bf16.mxu0 0
    %192 = vmatpush1.bf16.xpose.msra.mxu0 %v167
    %193 = vmatprep.subr.bf16.mxu0 0
    %194 = vmatpush1.bf16.xpose.msra.mxu0 %v166
    %195 = vmatprep.subr.bf16.mxu0 0
    %196 = vmatpush1.bf16.xpose.msra.mxu0 %v165
    %197 = vmatprep.subr.bf16.mxu0 0
    %198 = vmatpush2.bf16.xpose.msra.mxu0 0
    %199 = vmatprep.subr.bf16.mxu0 0
    %200 = vmatpush2.bf16.xpose.msra.mxu0 0
    %201 = vmatprep.subr.bf16.mxu0 0
    %202 = vmatpush2.bf16.xpose.msra.mxu0 0
    %203 = vmatprep.subr.bf16.mxu0 0
    %204 = vmatpush2.bf16.xpose.msra.mxu0 0
    %205 = vmatprep.subr.bf16.mxu0 0
    %206 = vmatpush2.bf16.xpose.msra.mxu0 0
    %207 = vmatprep.subr.bf16.mxu0 0
    %208 = vmatpush2.bf16.xpose.msra.mxu0 0
    %209 = vmatprep.subr.bf16.mxu0 0
    %210 = vmatpush2.bf16.xpose.msra.mxu0 0
    %211 = vmatprep.subr.bf16.mxu0 0
    %212 = vmatpush2.bf16.xpose.msra.mxu0 0
    %213 = vmatprep.mubr.bf16.mxu0 0
    %214 = vmatmul.mubr.bf16.gmra.mxu0 %v117
    %v215 = vpop.f32.mrf.mxu0
    %v216 = vadd.f32 0.0, %v215
    %v217 = vpop.f32.mrf.mxu0
    %v218 = vpop.f32.mrf.mxu0
    %v219 = vadd.f32 0.0, %v218
    %v220 = vpop.f32.mrf.mxu0
    %221 = vmatprep.mubr.bf16.mxu0 0
    %222 = vmatmul.mubr.bf16.gmra.mxu0 %v118
    %v223 = vpop.f32.mrf.mxu0
    %v224 = vadd.f32 0.0, %v223
    %v225 = vpop.f32.mrf.mxu0
    %v226 = vpop.f32.mrf.mxu0
    %v227 = vadd.f32 0.0, %v226
    %v228 = vpop.f32.mrf.mxu0
    %229 = vmatprep.mubr.bf16.mxu0 0
    %230 = vmatmul.mubr.bf16.gmra.mxu0 %v119
    %v231 = vpop.f32.mrf.mxu0
    %v232 = vadd.f32 0.0, %v231
    %v233 = vpop.f32.mrf.mxu0
    %v234 = vpop.f32.mrf.mxu0
    %v235 = vadd.f32 0.0, %v234
    %v236 = vpop.f32.mrf.mxu0
    %237 = vmatprep.mubr.bf16.mxu0 0
    %238 = vmatmul.mubr.bf16.gmra.mxu0 %v120
    %v239 = vpop.f32.mrf.mxu0
    %v240 = vadd.f32 0.0, %v239
    %v241 = vpop.f32.mrf.mxu0
    %v242 = vpop.f32.mrf.mxu0
    %v243 = vadd.f32 0.0, %v242
    %v244 = vpop.f32.mrf.mxu0
    %245 = vmatprep.mubr.bf16.mxu0 0
    %246 = vmatmul.mubr.bf16.gmra.mxu0 %v121
    %v247 = vpop.f32.mrf.mxu0
    %v248 = vadd.f32 0.0, %v247
    %v249 = vpop.f32.mrf.mxu0
    %v250 = vpop.f32.mrf.mxu0
    %v251 = vadd.f32 0.0, %v250
    %v252 = vpop.f32.mrf.mxu0
    %253 = vmatprep.mubr.bf16.mxu0 0
    %254 = vmatmul.mubr.bf16.gmra.mxu0 %v122
    %v255 = vpop.f32.mrf.mxu0
    %v256 = vadd.f32 0.0, %v255
    %v257 = vpop.f32.mrf.mxu0
    %v258 = vpop.f32.mrf.mxu0
    %v259 = vadd.f32 0.0, %v258
    %v260 = vpop.f32.mrf.mxu0
    %261 = vmatprep.mubr.bf16.mxu0 0
    %262 = vmatmul.mubr.bf16.gmra.mxu0 %v123
    %v263 = vpop.f32.mrf.mxu0
    %v264 = vadd.f32 0.0, %v263
    %v265 = vpop.f32.mrf.mxu0
    %v266 = vpop.f32.mrf.mxu0
    %v267 = vadd.f32 0.0, %v266
    %v268 = vpop.f32.mrf.mxu0
    %269 = vmatprep.mubr.bf16.mxu0 0
    %270 = vmatmul.mubr.bf16.gmra.mxu0 %v124
    %v271 = vpop.f32.mrf.mxu0
    %v272 = vadd.f32 0.0, %v271
    %v273 = vpop.f32.mrf.mxu0
    %v274 = vpop.f32.mrf.mxu0
    %v275 = vadd.f32 0.0, %v274
    %v276 = vpop.f32.mrf.mxu0
    %277 = vdwg.mxu0
    %v278 = vld [vmem:[%s2] sm:$0xff]
    %v279 = vld [vmem:[%s2 + $0x8] sm:$0xff]
    %v280 = vld [vmem:[%s2 + $0x10] sm:$0xff]
    %v281 = vld [vmem:[%s2 + $0x18] sm:$0xff]
    %v282 = vld [vmem:[%s2 + $0x20] sm:$0xff]
    %v283 = vld [vmem:[%s2 + $0x28] sm:$0xff]
    %v284 = vld [vmem:[%s2 + $0x30] sm:$0xff]
    %v285 = vld [vmem:[%s2 + $0x38] sm:$0xff]
    %v286 = vld [vmem:[%s2 + $0x40] sm:$0xff]
    %v287 = vld [vmem:[%s2 + $0x48] sm:$0xff]
    %v288 = vld [vmem:[%s2 + $0x50] sm:$0xff]
    %v289 = vld [vmem:[%s2 + $0x58] sm:$0xff]
    %v290 = vld [vmem:[%s2 + $0x60] sm:$0xff]
    %v291 = vld [vmem:[%s2 + $0x68] sm:$0xff]
    %v292 = vld [vmem:[%s2 + $0x70] sm:$0xff]
    %v293 = vld [vmem:[%s2 + $0x78] sm:$0xff]
    %v294 = vmul.f32 %v216, 2.0
    %v295 = vmul.f32 %v219, 2.0
    %v296 = vmul.f32 %v224, 2.0
    %v297 = vmul.f32 %v227, 2.0
    %v298 = vmul.f32 %v232, 2.0
    %v299 = vmul.f32 %v235, 2.0
    %v300 = vmul.f32 %v240, 2.0
    %v301 = vmul.f32 %v243, 2.0
    %v302 = vmul.f32 %v248, 2.0
    %v303 = vmul.f32 %v251, 2.0
    %v304 = vmul.f32 %v256, 2.0
    %v305 = vmul.f32 %v259, 2.0
    %v306 = vmul.f32 %v264, 2.0
    %v307 = vmul.f32 %v267, 2.0
    %v308 = vmul.f32 %v272, 2.0
    %v309 = vmul.f32 %v275, 2.0
    %311 = vset.pattern.permute.xlu0 0
    %312 = vperm.xlu0 %311, %v278
    %v313 = vpop.permute.xlu0 %312
    %316 = vset.pattern.permute.xlu0 0
    %317 = vperm.xlu0 %316, %v279
    %v318 = vpop.permute.xlu0 %317
    %321 = vset.pattern.permute.xlu0 0
    %322 = vperm.xlu0 %321, %v280
    %v323 = vpop.permute.xlu0 %322
    %326 = vset.pattern.permute.xlu0 0
    %327 = vperm.xlu0 %326, %v281
    %v328 = vpop.permute.xlu0 %327
    %331 = vset.pattern.permute.xlu0 0
    %332 = vperm.xlu0 %331, %v282
    %v333 = vpop.permute.xlu0 %332
    %336 = vset.pattern.permute.xlu0 0
    %337 = vperm.xlu0 %336, %v283
    %v338 = vpop.permute.xlu0 %337
    %341 = vset.pattern.permute.xlu0 0
    %342 = vperm.xlu0 %341, %v284
    %v343 = vpop.permute.xlu0 %342
    %346 = vset.pattern.permute.xlu0 0
    %347 = vperm.xlu0 %346, %v285
    %v348 = vpop.permute.xlu0 %347
    %351 = vset.pattern.permute.xlu0 0
    %352 = vperm.xlu0 %351, %v286
    %v353 = vpop.permute.xlu0 %352
    %356 = vset.pattern.permute.xlu0 0
    %357 = vperm.xlu0 %356, %v287
    %v358 = vpop.permute.xlu0 %357
    %361 = vset.pattern.permute.xlu0 0
    %362 = vperm.xlu0 %361, %v288
    %v363 = vpop.permute.xlu0 %362
    %366 = vset.pattern.permute.xlu0 0
    %367 = vperm.xlu0 %366, %v289
    %v368 = vpop.permute.xlu0 %367
    %371 = vset.pattern.permute.xlu0 0
    %372 = vperm.xlu0 %371, %v290
    %v373 = vpop.permute.xlu0 %372
    %376 = vset.pattern.permute.xlu0 0
    %377 = vperm.xlu0 %376, %v291
    %v378 = vpop.permute.xlu0 %377
    %381 = vset.pattern.permute.xlu0 0
    %382 = vperm.xlu0 %381, %v292
    %v383 = vpop.permute.xlu0 %382
    %386 = vset.pattern.permute.xlu0 0
    %387 = vperm.xlu0 %386, %v293
    %v388 = vpop.permute.xlu0 %387
    %v390 = vsub.f32 %v313, %v294
    %v391 = vsub.f32 %v318, %v295
    %v392 = vsub.f32 %v323, %v296
    %v393 = vsub.f32 %v328, %v297
    %v394 = vsub.f32 %v333, %v298
    %v395 = vsub.f32 %v338, %v299
    %v396 = vsub.f32 %v343, %v300
    %v397 = vsub.f32 %v348, %v301
    %v398 = vsub.f32 %v353, %v302
    %v399 = vsub.f32 %v358, %v303
    %v400 = vsub.f32 %v363, %v304
    %v401 = vsub.f32 %v368, %v305
    %v402 = vsub.f32 %v373, %v306
    %v403 = vsub.f32 %v378, %v307
    %v404 = vsub.f32 %v383, %v308
    %v405 = vsub.f32 %v388, %v309
    %v406 = vld [vmem:[%s3] sm:$0x1]
    %v408 = vlaneseq
    %v409 = vshrl.u32 %v408, 7
    %v410 = vsub.s32 0, %v409
    %v411 = vrot.slane %v406, %v410
    %v413 = vadd.f32 %v390, %v411
    %v414 = vadd.f32 %v391, %v411
    %v415 = vadd.f32 %v392, %v411
    %v416 = vadd.f32 %v393, %v411
    %v417 = vadd.f32 %v394, %v411
    %v418 = vadd.f32 %v395, %v411
    %v419 = vadd.f32 %v396, %v411
    %v420 = vadd.f32 %v397, %v411
    %v421 = vadd.f32 %v398, %v411
    %v422 = vadd.f32 %v399, %v411
    %v423 = vadd.f32 %v400, %v411
    %v424 = vadd.f32 %v401, %v411
    %v425 = vadd.f32 %v402, %v411
    %v426 = vadd.f32 %v403, %v411
    %v427 = vadd.f32 %v404, %v411
    %v428 = vadd.f32 %v405, %v411
    %v429 = vmax.f32 %v413, 0.0
    %v430 = vmax.f32 %v414, 0.0
    %v431 = vmax.f32 %v415, 0.0
    %v432 = vmax.f32 %v416, 0.0
    %v433 = vmax.f32 %v417, 0.0
    %v434 = vmax.f32 %v418, 0.0
    %v435 = vmax.f32 %v419, 0.0
    %v436 = vmax.f32 %v420, 0.0
    %v437 = vmax.f32 %v421, 0.0
    %v438 = vmax.f32 %v422, 0.0
    %v439 = vmax.f32 %v423, 0.0
    %v440 = vmax.f32 %v424, 0.0
    %v441 = vmax.f32 %v425, 0.0
    %v442 = vmax.f32 %v426, 0.0
    %v443 = vmax.f32 %v427, 0.0
    %v444 = vmax.f32 %v428, 0.0
    %s445 = smul.u32 0, 128
    %s446 = scalar_lea.vmem [#allocation2], %s445
    %447 = vst [vmem:[%s446] sm:$0xff] %v429
    %448 = vst [vmem:[%s446 + $0x8] sm:$0xff] %v430
    %449 = vst [vmem:[%s446 + $0x10] sm:$0xff] %v431
    %450 = vst [vmem:[%s446 + $0x18] sm:$0xff] %v432
    %451 = vst [vmem:[%s446 + $0x20] sm:$0xff] %v433
    %452 = vst [vmem:[%s446 + $0x28] sm:$0xff] %v434
    %453 = vst [vmem:[%s446 + $0x30] sm:$0xff] %v435
    %454 = vst [vmem:[%s446 + $0x38] sm:$0xff] %v436
    %455 = vst [vmem:[%s446 + $0x40] sm:$0xff] %v437
    %456 = vst [vmem:[%s446 + $0x48] sm:$0xff] %v438
    %457 = vst [vmem:[%s446 + $0x50] sm:$0xff] %v439
    %458 = vst [vmem:[%s446 + $0x58] sm:$0xff] %v440
    %459 = vst [vmem:[%s446 + $0x60] sm:$0xff] %v441
    %460 = vst [vmem:[%s446 + $0x68] sm:$0xff] %v442
    %461 = vst [vmem:[%s446 + $0x70] sm:$0xff] %v443
    %462 = vst [vmem:[%s446 + $0x78] sm:$0xff] %v444
    %v463 = vld [vmem:[%s4] sm:$0xff]
    %v464 = vld [vmem:[%s4 + $0x8] sm:$0xff]
    %v465 = vld [vmem:[%s4 + $0x10] sm:$0xff]
    %v466 = vld [vmem:[%s4 + $0x18] sm:$0xff]
    %v467 = vld [vmem:[%s4 + $0x20] sm:$0xff]
    %v468 = vld [vmem:[%s4 + $0x28] sm:$0xff]
    %v469 = vld [vmem:[%s4 + $0x30] sm:$0xff]
    %v470 = vld [vmem:[%s4 + $0x38] sm:$0xff]
    %v471 = vld [vmem:[%s4 + $0x40] sm:$0xff]
    %v472 = vld [vmem:[%s4 + $0x48] sm:$0xff]
    %v473 = vld [vmem:[%s4 + $0x50] sm:$0xff]
    %v474 = vld [vmem:[%s4 + $0x58] sm:$0xff]
    %v475 = vld [vmem:[%s4 + $0x60] sm:$0xff]
    %v476 = vld [vmem:[%s4 + $0x68] sm:$0xff]
    %v477 = vld [vmem:[%s4 + $0x70] sm:$0xff]
    %v478 = vld [vmem:[%s4 + $0x78] sm:$0xff]
    %v479 = vld [vmem:[%s5] sm:$0x1]
    %480 = vset.pattern.permute.xlu0 0
    %481 = vperm.xlu0 %480, %v463
    %v482 = vpop.permute.xlu0 %481
    %483 = vset.pattern.permute.xlu0 0
    %484 = vperm.xlu0 %483, %v464
    %v485 = vpop.permute.xlu0 %484
    %486 = vset.pattern.permute.xlu0 0
    %487 = vperm.xlu0 %486, %v465
    %v488 = vpop.permute.xlu0 %487
    %489 = vset.pattern.permute.xlu0 0
    %490 = vperm.xlu0 %489, %v466
    %v491 = vpop.permute.xlu0 %490
    %492 = vset.pattern.permute.xlu0 0
    %493 = vperm.xlu0 %492, %v467
    %v494 = vpop.permute.xlu0 %493
    %495 = vset.pattern.permute.xlu0 0
    %496 = vperm.xlu0 %495, %v468
    %v497 = vpop.permute.xlu0 %496
    %498 = vset.pattern.permute.xlu0 0
    %499 = vperm.xlu0 %498, %v469
    %v500 = vpop.permute.xlu0 %499
    %501 = vset.pattern.permute.xlu0 0
    %502 = vperm.xlu0 %501, %v470
    %v503 = vpop.permute.xlu0 %502
    %504 = vset.pattern.permute.xlu0 0
    %505 = vperm.xlu0 %504, %v471
    %v506 = vpop.permute.xlu0 %505
    %507 = vset.pattern.permute.xlu0 0
    %508 = vperm.xlu0 %507, %v472
    %v509 = vpop.permute.xlu0 %508
    %510 = vset.pattern.permute.xlu0 0
    %511 = vperm.xlu0 %510, %v473
    %v512 = vpop.permute.xlu0 %511
    %513 = vset.pattern.permute.xlu0 0
    %514 = vperm.xlu0 %513, %v474
    %v515 = vpop.permute.xlu0 %514
    %516 = vset.pattern.permute.xlu0 0
    %517 = vperm.xlu0 %516, %v475
    %v518 = vpop.permute.xlu0 %517
    %519 = vset.pattern.permute.xlu0 0
    %520 = vperm.xlu0 %519, %v476
    %v521 = vpop.permute.xlu0 %520
    %522 = vset.pattern.permute.xlu0 0
    %523 = vperm.xlu0 %522, %v477
    %v524 = vpop.permute.xlu0 %523
    %525 = vset.pattern.permute.xlu0 0
    %526 = vperm.xlu0 %525, %v478
    %v527 = vpop.permute.xlu0 %526
    %v528 = vlaneseq
    %v529 = vshrl.u32 %v528, 7
    %v530 = vsub.s32 0, %v529
    %v531 = vrot.slane %v479, %v530
    %vm532 = vcmp.eq.s32.totalorder %v482, %v531
    %vm533 = vcmp.eq.s32.totalorder %v485, %v531
    %vm534 = vcmp.eq.s32.totalorder %v488, %v531
    %vm535 = vcmp.eq.s32.totalorder %v491, %v531
    %vm536 = vcmp.eq.s32.totalorder %v494, %v531
    %vm537 = vcmp.eq.s32.totalorder %v497, %v531
    %vm538 = vcmp.eq.s32.totalorder %v500, %v531
    %vm539 = vcmp.eq.s32.totalorder %v503, %v531
    %vm540 = vcmp.eq.s32.totalorder %v506, %v531
    %vm541 = vcmp.eq.s32.totalorder %v509, %v531
    %vm542 = vcmp.eq.s32.totalorder %v512, %v531
    %vm543 = vcmp.eq.s32.totalorder %v515, %v531
    %vm544 = vcmp.eq.s32.totalorder %v518, %v531
    %vm545 = vcmp.eq.s32.totalorder %v521, %v531
    %vm546 = vcmp.eq.s32.totalorder %v524, %v531
    %vm547 = vcmp.eq.s32.totalorder %v527, %v531
    %v548 = vsel %vm532, inf, %v429
    %v549 = vsel %vm533, inf, %v430
    %v550 = vsel %vm534, inf, %v431
    %v551 = vsel %vm535, inf, %v432
    %v552 = vsel %vm536, inf, %v433
    %v553 = vsel %vm537, inf, %v434
    %v554 = vsel %vm538, inf, %v435
    %v555 = vsel %vm539, inf, %v436
    %v556 = vsel %vm540, inf, %v437
    %v557 = vsel %vm541, inf, %v438
    %v558 = vsel %vm542, inf, %v439
    %v559 = vsel %vm543, inf, %v440
    %v560 = vsel %vm544, inf, %v441
    %v561 = vsel %vm545, inf, %v442
    %v562 = vsel %vm546, inf, %v443
    %v563 = vsel %vm547, inf, %v444
    %v564 = vld [vmem:[#allocation3] sm:$0xff]
    %v565 = vld [vmem:[#allocation3 + $0x8] sm:$0xff]
    %v566 = vld [vmem:[#allocation3 + $0x10] sm:$0xff]
    %v567 = vld [vmem:[#allocation3 + $0x18] sm:$0xff]
    %v568 = vld [vmem:[#allocation3 + $0x20] sm:$0xff]
    %v569 = vld [vmem:[#allocation3 + $0x28] sm:$0xff]
    %v570 = vld [vmem:[#allocation3 + $0x30] sm:$0xff]
    %v571 = vld [vmem:[#allocation3 + $0x38] sm:$0xff]
    %v572 = vld [vmem:[#allocation3 + $0x40] sm:$0xff]
    %v573 = vld [vmem:[#allocation3 + $0x48] sm:$0xff]
    %v574 = vld [vmem:[#allocation3 + $0x50] sm:$0xff]
    %v575 = vld [vmem:[#allocation3 + $0x58] sm:$0xff]
    %v576 = vld [vmem:[#allocation3 + $0x60] sm:$0xff]
    %v577 = vld [vmem:[#allocation3 + $0x68] sm:$0xff]
    %v578 = vld [vmem:[#allocation3 + $0x70] sm:$0xff]
    %v579 = vld [vmem:[#allocation3 + $0x78] sm:$0xff]
    %v580 = vmin.f32 %v564, %v548
    %v581 = vmin.f32 %v565, %v549
    %v582 = vmin.f32 %v566, %v550
    %v583 = vmin.f32 %v567, %v551
    %v584 = vmin.f32 %v568, %v552
    %v585 = vmin.f32 %v569, %v553
    %v586 = vmin.f32 %v570, %v554
    %v587 = vmin.f32 %v571, %v555
    %v588 = vmin.f32 %v572, %v556
    %v589 = vmin.f32 %v573, %v557
    %v590 = vmin.f32 %v574, %v558
    %v591 = vmin.f32 %v575, %v559
    %v592 = vmin.f32 %v576, %v560
    %v593 = vmin.f32 %v577, %v561
    %v594 = vmin.f32 %v578, %v562
    %v595 = vmin.f32 %v579, %v563
    %596 = vst [vmem:[#allocation3] sm:$0xff] %v580
    %597 = vst [vmem:[#allocation3 + $0x8] sm:$0xff] %v581
    %598 = vst [vmem:[#allocation3 + $0x10] sm:$0xff] %v582
    %599 = vst [vmem:[#allocation3 + $0x18] sm:$0xff] %v583
    %600 = vst [vmem:[#allocation3 + $0x20] sm:$0xff] %v584
    %601 = vst [vmem:[#allocation3 + $0x28] sm:$0xff] %v585
    %602 = vst [vmem:[#allocation3 + $0x30] sm:$0xff] %v586
    %603 = vst [vmem:[#allocation3 + $0x38] sm:$0xff] %v587
    %604 = vst [vmem:[#allocation3 + $0x40] sm:$0xff] %v588
    %605 = vst [vmem:[#allocation3 + $0x48] sm:$0xff] %v589
    %606 = vst [vmem:[#allocation3 + $0x50] sm:$0xff] %v590
    %607 = vst [vmem:[#allocation3 + $0x58] sm:$0xff] %v591
    %608 = vst [vmem:[#allocation3 + $0x60] sm:$0xff] %v592
    %609 = vst [vmem:[#allocation3 + $0x68] sm:$0xff] %v593
    %610 = vst [vmem:[#allocation3 + $0x70] sm:$0xff] %v594
    %611 = vst [vmem:[#allocation3 + $0x78] sm:$0xff] %v595
    // Predicated region
    $region34: #{tpu_custom_call.1} parent=1 // pred_check
      %p612 = pneg %p31
    $region35: #{tpu_custom_call.1} parent=1 // pred_check_branch
      %614 = sbr.rel (%p612) target = $region37
    $region36: #{tpu_custom_call.1} parent=1 // pred_region
      %v615 = vld [vmem:[#allocation3] sm:$0xff]
      %v616 = vld [vmem:[#allocation3 + $0x8] sm:$0xff]
      %v617 = vld [vmem:[#allocation3 + $0x10] sm:$0xff]
      %v618 = vld [vmem:[#allocation3 + $0x18] sm:$0xff]
      %v619 = vld [vmem:[#allocation3 + $0x20] sm:$0xff]
      %v620 = vld [vmem:[#allocation3 + $0x28] sm:$0xff]
      %v621 = vld [vmem:[#allocation3 + $0x30] sm:$0xff]
      %v622 = vld [vmem:[#allocation3 + $0x38] sm:$0xff]
      %v623 = vld [vmem:[#allocation3 + $0x40] sm:$0xff]
      %v624 = vld [vmem:[#allocation3 + $0x48] sm:$0xff]
      %v625 = vld [vmem:[#allocation3 + $0x50] sm:$0xff]
      %v626 = vld [vmem:[#allocation3 + $0x58] sm:$0xff]
      %v627 = vld [vmem:[#allocation3 + $0x60] sm:$0xff]
      %v628 = vld [vmem:[#allocation3 + $0x68] sm:$0xff]
      %v629 = vld [vmem:[#allocation3 + $0x70] sm:$0xff]
      %v630 = vld [vmem:[#allocation3 + $0x78] sm:$0xff]
      %631 = vmin.xlane.f32.xlu0 %v615
      %v632 = vpop.xlane.xlu0 %631
      %633 = vmin.xlane.f32.xlu0 %v616
      %v634 = vpop.xlane.xlu0 %633
      %635 = vmin.xlane.f32.xlu0 %v617
      %v636 = vpop.xlane.xlu0 %635
      %637 = vmin.xlane.f32.xlu0 %v618
      %v638 = vpop.xlane.xlu0 %637
      %639 = vmin.xlane.f32.xlu0 %v619
      %v640 = vpop.xlane.xlu0 %639
      %641 = vmin.xlane.f32.xlu0 %v620
      %v642 = vpop.xlane.xlu0 %641
      %643 = vmin.xlane.f32.xlu0 %v621
      %v644 = vpop.xlane.xlu0 %643
      %645 = vmin.xlane.f32.xlu0 %v622
      %v646 = vpop.xlane.xlu0 %645
      %647 = vmin.xlane.f32.xlu0 %v623
      %v648 = vpop.xlane.xlu0 %647
      %649 = vmin.xlane.f32.xlu0 %v624
      %v650 = vpop.xlane.xlu0 %649
      %651 = vmin.xlane.f32.xlu0 %v625
      %v652 = vpop.xlane.xlu0 %651
      %653 = vmin.xlane.f32.xlu0 %v626
      %v654 = vpop.xlane.xlu0 %653
      %655 = vmin.xlane.f32.xlu0 %v627
      %v656 = vpop.xlane.xlu0 %655
      %657 = vmin.xlane.f32.xlu0 %v628
      %v658 = vpop.xlane.xlu0 %657
      %659 = vmin.xlane.f32.xlu0 %v629
      %v660 = vpop.xlane.xlu0 %659
      %661 = vmin.xlane.f32.xlu0 %v630
      %v662 = vpop.xlane.xlu0 %661
      %v663 = vsub.f32 %v632, 1.0
      %v664 = vsub.f32 %v634, 1.0
      %v665 = vsub.f32 %v636, 1.0
      %v666 = vsub.f32 %v638, 1.0
      %v667 = vsub.f32 %v640, 1.0
      %v668 = vsub.f32 %v642, 1.0
      %v669 = vsub.f32 %v644, 1.0
      %v670 = vsub.f32 %v646, 1.0
      %v671 = vsub.f32 %v648, 1.0
      %v672 = vsub.f32 %v650, 1.0
      %v673 = vsub.f32 %v652, 1.0
      %v674 = vsub.f32 %v654, 1.0
      %v675 = vsub.f32 %v656, 1.0
      %v676 = vsub.f32 %v658, 1.0
      %v677 = vsub.f32 %v660, 1.0
      %v678 = vsub.f32 %v662, 1.0
      %v679 = vld [vmem:[%s4] sm:$0xff]
      %v680 = vld [vmem:[%s4 + $0x8] sm:$0xff]
      %v681 = vld [vmem:[%s4 + $0x10] sm:$0xff]
      %v682 = vld [vmem:[%s4 + $0x18] sm:$0xff]
      %v683 = vld [vmem:[%s4 + $0x20] sm:$0xff]
      %v684 = vld [vmem:[%s4 + $0x28] sm:$0xff]
      %v685 = vld [vmem:[%s4 + $0x30] sm:$0xff]
      %v686 = vld [vmem:[%s4 + $0x38] sm:$0xff]
      %v687 = vld [vmem:[%s4 + $0x40] sm:$0xff]
      %v688 = vld [vmem:[%s4 + $0x48] sm:$0xff]
      %v689 = vld [vmem:[%s4 + $0x50] sm:$0xff]
      %v690 = vld [vmem:[%s4 + $0x58] sm:$0xff]
      %v691 = vld [vmem:[%s4 + $0x60] sm:$0xff]
      %v692 = vld [vmem:[%s4 + $0x68] sm:$0xff]
      %v693 = vld [vmem:[%s4 + $0x70] sm:$0xff]
      %v694 = vld [vmem:[%s4 + $0x78] sm:$0xff]
      %695 = vset.pattern.permute.xlu0 0
      %696 = vperm.xlu0 %695, %v679
      %v697 = vpop.permute.xlu0 %696
      %698 = vset.pattern.permute.xlu0 0
      %699 = vperm.xlu0 %698, %v680
      %v700 = vpop.permute.xlu0 %699
      %701 = vset.pattern.permute.xlu0 0
      %702 = vperm.xlu0 %701, %v681
      %v703 = vpop.permute.xlu0 %702
      %704 = vset.pattern.permute.xlu0 0
      %705 = vperm.xlu0 %704, %v682
      %v706 = vpop.permute.xlu0 %705
      %707 = vset.pattern.permute.xlu0 0
      %708 = vperm.xlu0 %707, %v683
      %v709 = vpop.permute.xlu0 %708
      %710 = vset.pattern.permute.xlu0 0
      %711 = vperm.xlu0 %710, %v684
      %v712 = vpop.permute.xlu0 %711
      %713 = vset.pattern.permute.xlu0 0
      %714 = vperm.xlu0 %713, %v685
      %v715 = vpop.permute.xlu0 %714
      %716 = vset.pattern.permute.xlu0 0
      %717 = vperm.xlu0 %716, %v686
      %v718 = vpop.permute.xlu0 %717
      %719 = vset.pattern.permute.xlu0 0
      %720 = vperm.xlu0 %719, %v687
      %v721 = vpop.permute.xlu0 %720
      %722 = vset.pattern.permute.xlu0 0
      %723 = vperm.xlu0 %722, %v688
      %v724 = vpop.permute.xlu0 %723
      %725 = vset.pattern.permute.xlu0 0
      %726 = vperm.xlu0 %725, %v689
      %v727 = vpop.permute.xlu0 %726
      %728 = vset.pattern.permute.xlu0 0
      %729 = vperm.xlu0 %728, %v690
      %v730 = vpop.permute.xlu0 %729
      %731 = vset.pattern.permute.xlu0 0
      %732 = vperm.xlu0 %731, %v691
      %v733 = vpop.permute.xlu0 %732
      %734 = vset.pattern.permute.xlu0 0
      %735 = vperm.xlu0 %734, %v692
      %v736 = vpop.permute.xlu0 %735
      %737 = vset.pattern.permute.xlu0 0
      %738 = vperm.xlu0 %737, %v693
      %v739 = vpop.permute.xlu0 %738
      %740 = vset.pattern.permute.xlu0 0
      %741 = vperm.xlu0 %740, %v694
      %v742 = vpop.permute.xlu0 %741
      %v743 = vld [vmem:[#allocation2] sm:$0xff]
      %v744 = vld [vmem:[#allocation2 + $0x8] sm:$0xff]
      %v745 = vld [vmem:[#allocation2 + $0x10] sm:$0xff]
      %v746 = vld [vmem:[#allocation2 + $0x18] sm:$0xff]
      %v747 = vld [vmem:[#allocation2 + $0x20] sm:$0xff]
      %v748 = vld [vmem:[#allocation2 + $0x28] sm:$0xff]
      %v749 = vld [vmem:[#allocation2 + $0x30] sm:$0xff]
      %v750 = vld [vmem:[#allocation2 + $0x38] sm:$0xff]
      %v751 = vld [vmem:[#allocation2 + $0x40] sm:$0xff]
      %v752 = vld [vmem:[#allocation2 + $0x48] sm:$0xff]
      %v753 = vld [vmem:[#allocation2 + $0x50] sm:$0xff]
      %v754 = vld [vmem:[#allocation2 + $0x58] sm:$0xff]
      %v755 = vld [vmem:[#allocation2 + $0x60] sm:$0xff]
      %v756 = vld [vmem:[#allocation2 + $0x68] sm:$0xff]
      %v757 = vld [vmem:[#allocation2 + $0x70] sm:$0xff]
      %v758 = vld [vmem:[#allocation2 + $0x78] sm:$0xff]
      %v759 = vld [vmem:[%s6] sm:$0x1]
      %v760 = vlaneseq
      %v761 = vshrl.u32 %v760, 7
      %v762 = vsub.s32 0, %v761
      %v763 = vrot.slane %v759, %v762
      %vm764 = vcmp.eq.s32.totalorder %v697, %v763
      %vm765 = vcmp.eq.s32.totalorder %v700, %v763
      %vm766 = vcmp.eq.s32.totalorder %v703, %v763
      %vm767 = vcmp.eq.s32.totalorder %v706, %v763
      %vm768 = vcmp.eq.s32.totalorder %v709, %v763
      %vm769 = vcmp.eq.s32.totalorder %v712, %v763
      %vm770 = vcmp.eq.s32.totalorder %v715, %v763
      %vm771 = vcmp.eq.s32.totalorder %v718, %v763
      %vm772 = vcmp.eq.s32.totalorder %v721, %v763
      %vm773 = vcmp.eq.s32.totalorder %v724, %v763
      %vm774 = vcmp.eq.s32.totalorder %v727, %v763
      %vm775 = vcmp.eq.s32.totalorder %v730, %v763
      %vm776 = vcmp.eq.s32.totalorder %v733, %v763
      %vm777 = vcmp.eq.s32.totalorder %v736, %v763
      %vm778 = vcmp.eq.s32.totalorder %v739, %v763
      %vm779 = vcmp.eq.s32.totalorder %v742, %v763
      %v780 = vsub.f32 %v743, %v663
      %v781 = vsub.f32 %v744, %v664
      %v782 = vsub.f32 %v745, %v665
      %v783 = vsub.f32 %v746, %v666
      %v784 = vsub.f32 %v747, %v667
      %v785 = vsub.f32 %v748, %v668
      %v786 = vsub.f32 %v749, %v669
      %v787 = vsub.f32 %v750, %v670
      %v788 = vsub.f32 %v751, %v671
      %v789 = vsub.f32 %v752, %v672
      %v790 = vsub.f32 %v753, %v673
      %v791 = vsub.f32 %v754, %v674
      %v792 = vsub.f32 %v755, %v675
      %v793 = vsub.f32 %v756, %v676
      %v794 = vsub.f32 %v757, %v677
      %v795 = vsub.f32 %v758, %v678
      %v796 = vmax.f32 %v780, 0.0
      %v797 = vmax.f32 %v781, 0.0
      %v798 = vmax.f32 %v782, 0.0
      %v799 = vmax.f32 %v783, 0.0
      %v800 = vmax.f32 %v784, 0.0
      %v801 = vmax.f32 %v785, 0.0
      %v802 = vmax.f32 %v786, 0.0
      %v803 = vmax.f32 %v787, 0.0
      %v804 = vmax.f32 %v788, 0.0
      %v805 = vmax.f32 %v789, 0.0
      %v806 = vmax.f32 %v790, 0.0
      %v807 = vmax.f32 %v791, 0.0
      %v808 = vmax.f32 %v792, 0.0
      %v809 = vmax.f32 %v793, 0.0
      %v810 = vmax.f32 %v794, 0.0
      %v811 = vmax.f32 %v795, 0.0
      %v812 = vsel %vm764, %v796, 0.0
      %v813 = vsel %vm765, %v797, 0.0
      %v814 = vsel %vm766, %v798, 0.0
      %v815 = vsel %vm767, %v799, 0.0
      %v816 = vsel %vm768, %v800, 0.0
      %v817 = vsel %vm769, %v801, 0.0
      %v818 = vsel %vm770, %v802, 0.0
      %v819 = vsel %vm771, %v803, 0.0
      %v820 = vsel %vm772, %v804, 0.0
      %v821 = vsel %vm773, %v805, 0.0
      %v822 = vsel %vm774, %v806, 0.0
      %v823 = vsel %vm775, %v807, 0.0
      %v824 = vsel %vm776, %v808, 0.0
      %v825 = vsel %vm777, %v809, 0.0
      %v826 = vsel %vm778, %v810, 0.0
      %v827 = vsel %vm779, %v811, 0.0
      %v828 = vadd.f32 %v812, %v813
      %v829 = vadd.f32 %v828, %v814
      %v830 = vadd.f32 %v829, %v815
      %v831 = vadd.f32 %v830, %v816
      %v832 = vadd.f32 %v831, %v817
      %v833 = vadd.f32 %v832, %v818
      %v834 = vadd.f32 %v833, %v819
      %v835 = vadd.f32 %v834, %v820
      %v836 = vadd.f32 %v835, %v821
      %v837 = vadd.f32 %v836, %v822
      %v838 = vadd.f32 %v837, %v823
      %v839 = vadd.f32 %v838, %v824
      %v840 = vadd.f32 %v839, %v825
      %v841 = vadd.f32 %v840, %v826
      %v842 = vadd.f32 %v841, %v827
      %v843 = vadd.f32 %v842, 0.0
      %v844 = vsel %vm764, 1, 0
      %v845 = vsel %vm765, 1, 0
      %v846 = vsel %vm766, 1, 0
      %v847 = vsel %vm767, 1, 0
      %v848 = vsel %vm768, 1, 0
      %v849 = vsel %vm769, 1, 0
      %v850 = vsel %vm770, 1, 0
      %v851 = vsel %vm771, 1, 0
      %v852 = vsel %vm772, 1, 0
      %v853 = vsel %vm773, 1, 0
      %v854 = vsel %vm774, 1, 0
      %v855 = vsel %vm775, 1, 0
      %v856 = vsel %vm776, 1, 0
      %v857 = vsel %vm777, 1, 0
      %v858 = vsel %vm778, 1, 0
      %v859 = vsel %vm779, 1, 0
      %v860 = vcvt.s32.f32 %v844
      %v861 = vcvt.s32.f32 %v845
      %v862 = vcvt.s32.f32 %v846
      %v863 = vcvt.s32.f32 %v847
      %v864 = vcvt.s32.f32 %v848
      %v865 = vcvt.s32.f32 %v849
      %v866 = vcvt.s32.f32 %v850
      %v867 = vcvt.s32.f32 %v851
      %v868 = vcvt.s32.f32 %v852
      %v869 = vcvt.s32.f32 %v853
      %v870 = vcvt.s32.f32 %v854
      %v871 = vcvt.s32.f32 %v855
      %v872 = vcvt.s32.f32 %v856
      %v873 = vcvt.s32.f32 %v857
      %v874 = vcvt.s32.f32 %v858
      %v875 = vcvt.s32.f32 %v859
      %v876 = vadd.f32 %v860, %v861
      %v877 = vadd.f32 %v876, %v862
      %v878 = vadd.f32 %v877, %v863
      %v879 = vadd.f32 %v878, %v864
      %v880 = vadd.f32 %v879, %v865
      %v881 = vadd.f32 %v880, %v866
      %v882 = vadd.f32 %v881, %v867
      %v883 = vadd.f32 %v882, %v868
      %v884 = vadd.f32 %v883, %v869
      %v885 = vadd.f32 %v884, %v870
      %v886 = vadd.f32 %v885, %v871
      %v887 = vadd.f32 %v886, %v872
      %v888 = vadd.f32 %v887, %v873
      %v889 = vadd.f32 %v888, %v874
      %v890 = vadd.f32 %v889, %v875
      %v891 = vadd.f32 %v890, 0.0
      %892 = vst [vmem:[#allocation4] sm:$0xff] %v843
      %893 = vst [vmem:[#allocation6] sm:$0xff] %v891
    $region37: #{tpu_custom_call.1} parent=1 // pred_fallthru
      _
    // Predicated region
    $region38: #{tpu_custom_call.1} parent=1 // pred_check
      _
    $region39: #{tpu_custom_call.1} parent=1 // pred_check_branch
      %895 = sbr.rel (0) target = $region41
    $region40: #{tpu_custom_call.1} parent=1 // pred_region
      %s897 = ssub.s32 128, 128
      %898 = vsyncadd [#allocation5], %s897
      %s900 = sshll.u32 [#allocation4], 4
      %s901 = int_to_ptr.vmem [resolvable:$true] %s900
      %903 = dma.vmem_to_hbm [thread:$0]  %s901, 128, %s7, [#allocation5]
    $region41: #{tpu_custom_call.1} parent=1 // pred_fallthru
      _
    // Predicated region
    $region42: #{tpu_custom_call.1} parent=1 // pred_check
      _
    $region43: #{tpu_custom_call.1} parent=1 // pred_check_branch
      %905 = sbr.rel (0) target = $region45
    $region44: #{tpu_custom_call.1} parent=1 // pred_region
      %s907 = ssub.s32 128, 128
      %908 = vsyncadd [#allocation7], %s907
      %s910 = sshll.u32 [#allocation6], 4
      %s911 = int_to_ptr.vmem [resolvable:$true] %s910
      %913 = dma.vmem_to_hbm [thread:$0]  %s911, 128, %s8, [#allocation7]
    $region45: #{tpu_custom_call.1} parent=1 // pred_fallthru
      _
    // Predicated region
    $region46: #{tpu_custom_call.1} parent=1 // pred_check
      _
    $region47: #{tpu_custom_call.1} parent=1 // pred_check_branch
      %915 = sbr.rel (0) target = $region49
    $region48: #{tpu_custom_call.1} parent=1 // pred_region
      %916 = dma.done [#allocation5], 128
    $region49: #{tpu_custom_call.1} parent=1 // pred_fallthru
      _
    // Predicated region
    $region50: #{tpu_custom_call.1} parent=1 // pred_check
      _
    $region51: #{tpu_custom_call.1} parent=1 // pred_check_branch
      %918 = sbr.rel (0) target = $region53
    $region52: #{tpu_custom_call.1} parent=1 // pred_region
      %919 = dma.done [#allocation7], 128
    $region53: #{tpu_custom_call.1} parent=1 // pred_fallthru
      _
    %920 = vsyncpa [#allocation5], 1
    %921 = vsyncpa [#allocation7], 1

</llo_original>
